<compile_context>
chip_gen: v5e
topology: v5e:2x2
jax: 0.10.0
libtpu: 0.0.40
codegen_flags: <defaults>
</compile_context>

<pallas_src>
import jax
import jax.numpy as jnp
from jax.experimental import pallas as pl
from jax.experimental.pallas import tpu as pltpu

SUB = 8                      # sublane multiple (also padded input feature width)
LANE = 128                   # lane multiple
NMAT = 5                     # fused layer count: [W1@W2, W3, W4, W5, sum-folded W6]
MAX_TB = 512                 # batch-tile rows once B grows large
SPLIT_MIN_ROWS = 512         # split batch into >=2 grid steps at/above this (v7x megacore)
NARROW_OUT_MIN_ROWS = 1024   # switch to an 8-lane output block at/above this row count
HIGH = jax.lax.Precision.HIGHEST


def _round_up(x, m):
    return ((x + m - 1) // m) * m


def _pad2d(x, rows, cols):
    r, c = x.shape
    return jnp.pad(x, ((0, rows - r), (0, cols - c)))


# ----------------------------------------------------------------------------
# Kernel: 5 fused Linear layers (ReLU on the middle four).
#   x_ref  : (tb, 8)        padded state (cols 0..2 valid)
#   w0_ref : (8, 128)       fused W1@W2, padded
#   w_ref  : (4, 128, 128)  W3, W4, W5, sum-folded W6, padded
#   b_ref  : (8, 128)       f32 bias rows 0..4 valid
#   out_ref: (tb, 8 or 128) valid result in column 0
# ----------------------------------------------------------------------------
def _rlnet_kernel(x_ref, w0_ref, w_ref, b_ref, out_ref):
    cdt = w_ref.dtype                       # matched MXU operand dtype (f32 or bf16)
    b = b_ref[...]                          # (8, 128) f32
    x = x_ref[...].astype(cdt)              # (tb, 8)

    # fused layer1 + hidden1 (EXACT: layer1 has no activation in forward())
    h = jnp.dot(x, w0_ref[...], preferred_element_type=jnp.float32) + b[0:1, :]
    h = jnp.maximum(h, 0.0)                 # bias + ReLU stay f32 (v5e-safe)

    # hidden2 .. hidden4: Linear + ReLU
    for i in range(3):
        h = jnp.dot(h.astype(cdt), w_ref[i],
                    preferred_element_type=jnp.float32) + b[i + 1:i + 2, :]
        h = jnp.maximum(h, 0.0)

    # out + sum(dim=1) folded into a single matvec padded to 128 lanes
    # (valid result in column 0, remaining lanes exactly zero).
    o = jnp.dot(h.astype(cdt), w_ref[3],
                preferred_element_type=jnp.float32) + b[4:5, :]
    out_ref[...] = o[:, :out_ref.shape[1]]


# ----------------------------------------------------------------------------
# Parameter prep (run once, outside the per-step path).
# ----------------------------------------------------------------------------
def init_params(key, hidden1, hidden2, hidden3, hidden4, n):
    """PyTorch-style Linear init: U(-1/sqrt(fan_in), 1/sqrt(fan_in)).
    Weights stored (in, out); biases stored (1, out)."""
    dims = [(3, hidden1), (hidden1, hidden2), (hidden2, hidden3),
            (hidden3, hidden4), (hidden4, hidden4), (hidden4, n)]
    params = []
    for (fan_in, fan_out) in dims:
        key, kw, kb = jax.random.split(key, 3)
        bound = 1.0 / jnp.sqrt(jnp.float32(fan_in))
        w = jax.random.uniform(kw, (fan_in, fan_out), jnp.float32, -bound, bound)
        b = jax.random.uniform(kb, (1, fan_out), jnp.float32, -bound, bound)
        params.append((w, b))
    return params


def prepare_params(params, dtype=jnp.float32):
    """Fuse + pad + pack once.

    Returns (w0 (8,128), w_slab (4,128,128), b_slab (8,128) f32).

    NOTE: the W1@W2 fold is exact only because layer1 has no activation, and
    the W6-sum fold is exact only because sum(dim=1) is linear.  Use
    dtype=jnp.bfloat16 on v5e/v6e/v7x for native-rate bf16 MXU dots (the kernel
    casts the dot LHS to match; accumulation and bias/ReLU remain f32) — loosen
    the correctness tolerance accordingly."""
    (w1, b1), (w2, b2), (w3, b3), (w4, b4), (w5, b5), (w6, b6) = params
    for h in (w2.shape[0], w3.shape[0], w4.shape[0], w5.shape[0], w6.shape[0]):
        assert h <= LANE, "hidden sizes > 128 need a K-tiled kernel"

    w12 = jnp.dot(w1, w2, precision=HIGH)                 # (3, h2)
    b12 = jnp.dot(b1, w2, precision=HIGH) + b2            # (1, h2)
    w6s = jnp.sum(w6, axis=1, keepdims=True)              # (h4, 1)
    b6s = jnp.sum(b6, axis=1, keepdims=True)              # (1, 1)

    w0 = _pad2d(w12, SUB, LANE).astype(dtype)                          # (8, 128)
    w_slab = jnp.stack([_pad2d(m, LANE, LANE)
                        for m in (w3, w4, w5, w6s)]).astype(dtype)     # (4, 128, 128)
    b_rows = jnp.concatenate([_pad2d(v, 1, LANE)
                              for v in (b12, b3, b4, b5, b6s)], axis=0)
    b_slab = jnp.pad(b_rows, ((0, SUB - NMAT), (0, 0))).astype(jnp.float32)
    return w0, w_slab, b_slab


# ----------------------------------------------------------------------------
# Forward (jit'ed; per-step cost is essentially one pallas_call).
# ----------------------------------------------------------------------------
@jax.jit
def rlnetwork_forward(state, w0, w_slab, b_slab):
    """Torch-equivalent of `out.sum(dim=1).squeeze(dim=0)` for state (B, 3)."""
    B, f_in = state.shape
    assert f_in == 3

    # --- batch tiling ---------------------------------------------------
    B_pad = _round_up(max(B, SUB), SUB)
    if B_pad > MAX_TB:
        tb = MAX_TB
        B_pad = _round_up(B_pad, tb)
    elif B_pad >= SPLIT_MIN_ROWS:
        tb = _round_up(B_pad // 2, SUB)        # >=2 grid steps -> both v7x TCs busy
        B_pad = 2 * tb
    else:
        tb = B_pad                             # small RL batch: single grid step
    grid = (B_pad // tb,)

    # narrow (8-lane) output block only for throughput batches; lane-dense for RL-size B
    out_w = SUB if B_pad >= NARROW_OUT_MIN_ROWS else LANE

    # pad input only to 8 feature lanes (not 128): 16x less input DMA
    x_p = _pad2d(state.astype(jnp.float32), B_pad, SUB)

    flops = 2 * B_pad * (SUB * LANE + 4 * LANE * LANE)
    bytes_accessed = (
        x_p.size * x_p.dtype.itemsize
        + w0.size * w0.dtype.itemsize
        + w_slab.size * w_slab.dtype.itemsize
        + b_slab.size * b_slab.dtype.itemsize
        + B_pad * out_w * 4)

    out_padded = pl.pallas_call(
        _rlnet_kernel,
        out_shape=jax.ShapeDtypeStruct((B_pad, out_w), jnp.float32),
        grid=grid,
        in_specs=[
            pl.BlockSpec((tb, SUB), lambda i: (i, 0)),                  # activations
            pl.BlockSpec((SUB, LANE), lambda i: (0, 0)),                # fused W1@W2
            pl.BlockSpec((NMAT - 1, LANE, LANE), lambda i: (0, 0, 0)),  # weight slab
            pl.BlockSpec((SUB, LANE), lambda i: (0, 0)),                # bias slab
        ],
        out_specs=pl.BlockSpec((tb, out_w), lambda i: (i, 0)),
        compiler_params=pltpu.CompilerParams(
            dimension_semantics=("parallel",)),
        cost_estimate=pl.CostEstimate(
            flops=flops, transcendentals=0, bytes_accessed=bytes_accessed),
    )(x_p, w0, w_slab, b_slab)

    res = out_padded[:B, 0]              # (B,)  == output.sum(dim=1)
    if B == 1:                           # torch .squeeze(dim=0)
        res = res[0]
    return res


# ----------------------------------------------------------------------------
# Pure-JAX reference on the *unfused* params (checks the fusions are exact).
# ----------------------------------------------------------------------------
def _reference(state, params):
    h = jnp.dot(state, params[0][0], precision=HIGH) + params[0][1]
    for (w, b) in params[1:5]:
        h = jnp.maximum(jnp.dot(h, w, precision=HIGH) + b, 0.0)
    o = jnp.dot(h, params[5][0], precision=HIGH) + params[5][1]
    r = o.sum(axis=1)
    return r[0] if state.shape[0] == 1 else r


if __name__ == "__main__":
    key = jax.random.PRNGKey(0)
    k_param, k_state = jax.random.split(key)

    hidden1 = hidden2 = hidden3 = hidden4 = 32
    n = 8
    B = 2

    params = init_params(k_param, hidden1, hidden2, hidden3, hidden4, n)
    state = jax.random.normal(k_state, (B, 3), jnp.float32)
    ref = _reference(state, params)

    # --- f32 path (tight correctness check) -----------------------------
    w0, w_slab, b_slab = prepare_params(params)            # one-time prep (cache this)
    out = jax.block_until_ready(rlnetwork_forward(state, w0, w_slab, b_slab))
    assert out.shape == ref.shape, (out.shape, ref.shape)
    assert jnp.allclose(out, ref, atol=2e-4, rtol=2e-4), (out, ref)

    # --- bf16 matched-operand path (native MXU rate on v5e/v6e/v7x) -----
    w0_b, w_slab_b, b_slab_b = prepare_params(params, dtype=jnp.bfloat16)
    out_b = jax.block_until_ready(rlnetwork_forward(state, w0_b, w_slab_b, b_slab_b))
    assert out_b.shape == ref.shape, (out_b.shape, ref.shape)
    assert jnp.allclose(out_b, ref, atol=1e-1, rtol=1e-1), (out_b, ref)

    print("KERNEL_OK")
</pallas_src>

<mosaic_0001>
module attributes {stable_mosaic.version = 11 : i64} {
  func.func @_rlnet_kernel(%arg0: i32, %arg1: memref<8x8xf32, #tpu.memory_space<vmem>>, %arg2: memref<8x128xf32, #tpu.memory_space<vmem>>, %arg3: memref<4x128x128xf32, #tpu.memory_space<vmem>>, %arg4: memref<8x128xf32, #tpu.memory_space<vmem>>, %arg5: memref<8x128xf32, #tpu.memory_space<vmem>>) attributes {dimension_semantics = [#tpu.dimension_semantics<parallel>], iteration_bounds = array<i64: 1>, scalar_prefetch = 0 : i64, scratch_operands = 0 : i64, tpu.core_type = #tpu.core_type<tc>, window_params = [{transform_indices = @transform_0, window_bounds = array<i64: 8, 8>}, {pipeline_mode = #tpu.pipeline_mode<synchronous>, transform_indices = @transform_1, window_bounds = array<i64: 8, 128>}, {pipeline_mode = #tpu.pipeline_mode<synchronous>, transform_indices = @transform_2, window_bounds = array<i64: 4, 128, 128>}, {pipeline_mode = #tpu.pipeline_mode<synchronous>, transform_indices = @transform_3, window_bounds = array<i64: 8, 128>}, {transform_indices = @transform_4, window_bounds = array<i64: 8, 128>}]} {
    %c0 = arith.constant 0 : index
    %c0_0 = arith.constant 0 : index
    %0 = vector.load %arg4[%c0, %c0_0] : memref<8x128xf32, #tpu.memory_space<vmem>>, vector<8x128xf32>
    %c0_1 = arith.constant 0 : index
    %c0_2 = arith.constant 0 : index
    %1 = vector.load %arg1[%c0_1, %c0_2] : memref<8x8xf32, #tpu.memory_space<vmem>>, vector<8x8xf32>
    %c0_3 = arith.constant 0 : index
    %c0_4 = arith.constant 0 : index
    %2 = vector.load %arg2[%c0_3, %c0_4] : memref<8x128xf32, #tpu.memory_space<vmem>>, vector<8x128xf32>
    %cst = arith.constant dense<0.000000e+00> : vector<8x128xf32>
    %3 = tpu.matmul %1, %2, %cst {dimension_numbers = #tpu.dot_dimension_numbers<[1], [0], [0], [1], [0, 0, 1, 1], [], []>} : vector<8x8xf32>, vector<8x128xf32>, vector<8x128xf32> -> vector<8x128xf32>
    %4 = vector.extract_strided_slice %0 {offsets = [0, 0], sizes = [1, 128], strides = [1, 1]} : vector<8x128xf32> to vector<1x128xf32>
    %5 = vector.broadcast %4 : vector<1x128xf32> to vector<8x128xf32>
    %6 = arith.addf %3, %5 : vector<8x128xf32>
    %cst_5 = arith.constant 0.000000e+00 : f32
    %7 = vector.broadcast %cst_5 : f32 to vector<8x128xf32>
    %8 = arith.maximumf %6, %7 : vector<8x128xf32>
    %c0_6 = arith.constant 0 : index
    %c0_7 = arith.constant 0 : index
    %c0_8 = arith.constant 0 : index
    %9 = vector.load %arg3[%c0_6, %c0_7, %c0_8] : memref<4x128x128xf32, #tpu.memory_space<vmem>>, vector<1x128x128xf32>
    %10 = vector.shape_cast %9 : vector<1x128x128xf32> to vector<128x128xf32>
    %cst_9 = arith.constant dense<0.000000e+00> : vector<8x128xf32>
    %11 = tpu.matmul %8, %10, %cst_9 {dimension_numbers = #tpu.dot_dimension_numbers<[1], [0], [0], [1], [0, 0, 1, 1], [], []>} : vector<8x128xf32>, vector<128x128xf32>, vector<8x128xf32> -> vector<8x128xf32>
    %12 = vector.extract_strided_slice %0 {offsets = [1, 0], sizes = [1, 128], strides = [1, 1]} : vector<8x128xf32> to vector<1x128xf32>
    %13 = vector.broadcast %12 : vector<1x128xf32> to vector<8x128xf32>
    %14 = arith.addf %11, %13 : vector<8x128xf32>
    %cst_10 = arith.constant 0.000000e+00 : f32
    %15 = vector.broadcast %cst_10 : f32 to vector<8x128xf32>
    %16 = arith.maximumf %14, %15 : vector<8x128xf32>
    %c1 = arith.constant 1 : index
    %c0_11 = arith.constant 0 : index
    %c0_12 = arith.constant 0 : index
    %17 = vector.load %arg3[%c1, %c0_11, %c0_12] : memref<4x128x128xf32, #tpu.memory_space<vmem>>, vector<1x128x128xf32>
    %18 = vector.shape_cast %17 : vector<1x128x128xf32> to vector<128x128xf32>
    %cst_13 = arith.constant dense<0.000000e+00> : vector<8x128xf32>
    %19 = tpu.matmul %16, %18, %cst_13 {dimension_numbers = #tpu.dot_dimension_numbers<[1], [0], [0], [1], [0, 0, 1, 1], [], []>} : vector<8x128xf32>, vector<128x128xf32>, vector<8x128xf32> -> vector<8x128xf32>
    %20 = vector.extract_strided_slice %0 {offsets = [2, 0], sizes = [1, 128], strides = [1, 1]} : vector<8x128xf32> to vector<1x128xf32>
    %21 = vector.broadcast %20 : vector<1x128xf32> to vector<8x128xf32>
    %22 = arith.addf %19, %21 : vector<8x128xf32>
    %cst_14 = arith.constant 0.000000e+00 : f32
    %23 = vector.broadcast %cst_14 : f32 to vector<8x128xf32>
    %24 = arith.maximumf %22, %23 : vector<8x128xf32>
    %c2 = arith.constant 2 : index
    %c0_15 = arith.constant 0 : index
    %c0_16 = arith.constant 0 : index
    %25 = vector.load %arg3[%c2, %c0_15, %c0_16] : memref<4x128x128xf32, #tpu.memory_space<vmem>>, vector<1x128x128xf32>
    %26 = vector.shape_cast %25 : vector<1x128x128xf32> to vector<128x128xf32>
    %cst_17 = arith.constant dense<0.000000e+00> : vector<8x128xf32>
    %27 = tpu.matmul %24, %26, %cst_17 {dimension_numbers = #tpu.dot_dimension_numbers<[1], [0], [0], [1], [0, 0, 1, 1], [], []>} : vector<8x128xf32>, vector<128x128xf32>, vector<8x128xf32> -> vector<8x128xf32>
    %28 = vector.extract_strided_slice %0 {offsets = [3, 0], sizes = [1, 128], strides = [1, 1]} : vector<8x128xf32> to vector<1x128xf32>
    %29 = vector.broadcast %28 : vector<1x128xf32> to vector<8x128xf32>
    %30 = arith.addf %27, %29 : vector<8x128xf32>
    %cst_18 = arith.constant 0.000000e+00 : f32
    %31 = vector.broadcast %cst_18 : f32 to vector<8x128xf32>
    %32 = arith.maximumf %30, %31 : vector<8x128xf32>
    %c3 = arith.constant 3 : index
    %c0_19 = arith.constant 0 : index
    %c0_20 = arith.constant 0 : index
    %33 = vector.load %arg3[%c3, %c0_19, %c0_20] : memref<4x128x128xf32, #tpu.memory_space<vmem>>, vector<1x128x128xf32>
    %34 = vector.shape_cast %33 : vector<1x128x128xf32> to vector<128x128xf32>
    %cst_21 = arith.constant dense<0.000000e+00> : vector<8x128xf32>
    %35 = tpu.matmul %32, %34, %cst_21 {dimension_numbers = #tpu.dot_dimension_numbers<[1], [0], [0], [1], [0, 0, 1, 1], [], []>} : vector<8x128xf32>, vector<128x128xf32>, vector<8x128xf32> -> vector<8x128xf32>
    %36 = vector.extract_strided_slice %0 {offsets = [4, 0], sizes = [1, 128], strides = [1, 1]} : vector<8x128xf32> to vector<1x128xf32>
    %37 = vector.broadcast %36 : vector<1x128xf32> to vector<8x128xf32>
    %38 = arith.addf %35, %37 : vector<8x128xf32>
    %c0_22 = arith.constant 0 : index
    %c0_23 = arith.constant 0 : index
    %39 = vector.load %arg5[%c0_22, %c0_23] : memref<8x128xf32, #tpu.memory_space<vmem>>, vector<8x128xf32>
    tpu.vector_store %arg5[%c0_22, %c0_23], %38 {strides = array<i32>} : memref<8x128xf32, #tpu.memory_space<vmem>>, vector<8x128xf32>,
    return
  }
  func.func @transform_0(%arg0: i32) -> (i32, i32) {
    %c0_i32 = arith.constant 0 : i32
    %c0_i32_0 = arith.constant 0 : i32
    return %arg0, %c0_i32 : i32, i32
  }
  func.func @transform_1(%arg0: i32) -> (i32, i32) {
    %c0_i32 = arith.constant 0 : i32
    %c0_i32_0 = arith.constant 0 : i32
    %c0_i32_1 = arith.constant 0 : i32
    return %c0_i32, %c0_i32_0 : i32, i32
  }
  func.func @transform_2(%arg0: i32) -> (i32, i32, i32) {
    %c0_i32 = arith.constant 0 : i32
    %c0_i32_0 = arith.constant 0 : i32
    %c0_i32_1 = arith.constant 0 : i32
    %c0_i32_2 = arith.constant 0 : i32
    return %c0_i32, %c0_i32_0, %c0_i32_1 : i32, i32, i32
  }
  func.func @transform_3(%arg0: i32) -> (i32, i32) {
    %c0_i32 = arith.constant 0 : i32
    %c0_i32_0 = arith.constant 0 : i32
    %c0_i32_1 = arith.constant 0 : i32
    return %c0_i32, %c0_i32_0 : i32, i32
  }
  func.func @transform_4(%arg0: i32) -> (i32, i32) {
    %c0_i32 = arith.constant 0 : i32
    %c0_i32_0 = arith.constant 0 : i32
    return %arg0, %c0_i32 : i32, i32
  }
}

</mosaic_0001>

<llo_original>
// kernel: rlnetwork_forward.1
$region0: #{rlnetwork_forward.1}
  #allocation0 [shape = 'u32[]', space=smem, size = 0x4, offset = 0x4, fixed_abs, tag = 'smem constant byte address 0x4 - core index']
  #allocation1 [shape = 'u32[72,128]{1,0:T(1,128)}', space=vmem, size = 0x9000, scoped, tag = 'internal scratch']
  %s0 = inlined_call_operand.vmem [shape: f32[8,8], index: 0, kind: input, shape index: {}]
  %s1 = inlined_call_operand.vmem [shape: f32[8,128], index: 1, kind: input, shape index: {}]
  %s2 = inlined_call_operand.hbm [shape: f32[4,128,128], index: 2, kind: input, shape index: {}]
  %s3 = inlined_call_operand.hbm [shape: f32[8,128], index: 3, kind: input, shape index: {}]
  %s4 = inlined_call_operand.vmem [shape: f32[8,128], index: 4, kind: output, shape index: {}]
  %s5 = sld [smem:[#allocation0]]
  $region34: #{rlnetwork_forward.1} parent=0
    _
  %s7 = ssub.s32 1, %s5
  %s8 = scalar_select 0, %s7, %s5
  $region1: #{rlnetwork_forward.1} parent=0
    #allocation2 [shape = 'u8[262144]{0}', space=vmem, size = 0x40000, scoped, tag = 'input window, operand 2, single buffered']
    #allocation3 [shape = 's32[1]{0}', space=sflag, size = 0x4, scoped, tag = 'scoped memory for rlnetwork_forward.1']
    #allocation4 [shape = 'u8[4096]{0}', space=vmem, size = 0x1000, scoped, tag = 'input window, operand 3, single buffered']
    #allocation5 [shape = 's32[1]{0}', space=sflag, size = 0x4, scoped, tag = 'scoped memory for rlnetwork_forward.1']
    %9 = vsyncpa [#allocation3], 0
    %10 = vsyncpa [#allocation5], 0
    // Predicated region
    $region2: #{rlnetwork_forward.1} parent=1 // pred_check
      _
    $region3: #{rlnetwork_forward.1} parent=1 // pred_check_branch
      %12 = sbr.rel (0) target = $region5
    $region4: #{rlnetwork_forward.1} parent=1 // pred_region
      _
    $region5: #{rlnetwork_forward.1} parent=1 // pred_fallthru
      _
    // Predicated region
    $region6: #{rlnetwork_forward.1} parent=1 // pred_check
      _
    $region7: #{rlnetwork_forward.1} parent=1 // pred_check_branch
      %14 = sbr.rel (0) target = $region9
    $region8: #{rlnetwork_forward.1} parent=1 // pred_region
      _
    $region9: #{rlnetwork_forward.1} parent=1 // pred_fallthru
      _
    // Predicated region
    $region10: #{rlnetwork_forward.1} parent=1 // pred_check
      _
    $region11: #{rlnetwork_forward.1} parent=1 // pred_check_branch
      %16 = sbr.rel (0) target = $region13
    $region12: #{rlnetwork_forward.1} parent=1 // pred_region
      %18 = vsyncadd [#allocation3], 0
      %s19 = sshll.u32 %s2, 4
      %s20 = int_to_ptr.hbm [resolvable:$true] %s19
      %s21 = sshll.u32 [#allocation2], 4
      %s22 = int_to_ptr.vmem [resolvable:$true] %s21
      %27 = dma.hbm_to_vmem [thread:$0]  %s20, 8192, %s22, [#allocation3], 128, 128, 8
    $region13: #{rlnetwork_forward.1} parent=1 // pred_fallthru
      _
    // Predicated region
    $region14: #{rlnetwork_forward.1} parent=1 // pred_check
      _
    $region15: #{rlnetwork_forward.1} parent=1 // pred_check_branch
      %29 = sbr.rel (0) target = $region17
    $region16: #{rlnetwork_forward.1} parent=1 // pred_region
      %31 = vsyncadd [#allocation5], 0
      %s33 = sshll.u32 %s3, 4
      %s34 = int_to_ptr.hbm [resolvable:$true] %s33
      %s35 = sshll.u32 [#allocation4], 4
      %s36 = int_to_ptr.vmem [resolvable:$true] %s35
      %38 = dma.hbm_to_vmem [thread:$0]  %s34, 128, %s36, [#allocation5]
    $region17: #{rlnetwork_forward.1} parent=1 // pred_fallthru
      _
    // Predicated region
    $region18: #{rlnetwork_forward.1} parent=1 // pred_check
      _
    $region19: #{rlnetwork_forward.1} parent=1 // pred_check_branch
      %40 = sbr.rel (0) target = $region21
    $region20: #{rlnetwork_forward.1} parent=1 // pred_region
      %42 = dma.done [#allocation3], 8192
    $region21: #{rlnetwork_forward.1} parent=1 // pred_fallthru
      _
    // Predicated region
    $region22: #{rlnetwork_forward.1} parent=1 // pred_check
      _
    $region23: #{rlnetwork_forward.1} parent=1 // pred_check_branch
      %44 = sbr.rel (0) target = $region25
    $region24: #{rlnetwork_forward.1} parent=1 // pred_region
      %46 = dma.done [#allocation5], 128
    $region25: #{rlnetwork_forward.1} parent=1 // pred_fallthru
      _
    %v47 = vld [vmem:[#allocation4] sm:$0xff]
    %v48 = vld [vmem:[%s0] sm:$0xff]
    %v49 = vld [vmem:[%s1] sm:$0xff]
    %v50 = vperm.slane %v47, 0
    %vm51 = vcmask 64512
    %v53 = vsel %vm51, %v48, 0
    %55 = vmatpush.msra.mxu0 0.0
    %56 = vmatpush.msra.mxu0 0.0
    %57 = vmatpush.msra.mxu0 0.0
    %58 = vmatpush.msra.mxu0 0.0
    %59 = vmatpush.msra.mxu0 0.0
    %60 = vmatpush.msra.mxu0 0.0
    %61 = vmatpush.msra.mxu0 0.0
    %62 = vmatpush.msra.mxu0 0.0
    %63 = vmatpush.msra.mxu0 0.0
    %64 = vmatpush.msra.mxu0 0.0
    %65 = vmatpush.msra.mxu0 0.0
    %66 = vmatpush.msra.mxu0 0.0
    %67 = vmatpush.msra.mxu0 0.0
    %68 = vmatpush.msra.mxu0 0.0
    %69 = vmatpush.msra.mxu0 0.0
    %70 = vmatpush.msra.mxu0 %v49
    %71 = vmatmul.f32.gmra.mxu0 %v53
    %v72 = vpop.f32.mrf.mxu0
    %v73 = vadd.f32 %v50, %v72
    %74 = vdwg.mxu0
    %v75 = vmax.f32 %v73, 0.0
    %v76 = vld [vmem:[#allocation2] sm:$0xff]
    %v77 = vld [vmem:[#allocation2 + $0x8] sm:$0xff]
    %v78 = vld [vmem:[#allocation2 + $0x10] sm:$0xff]
    %v79 = vld [vmem:[#allocation2 + $0x18] sm:$0xff]
    %v80 = vld [vmem:[#allocation2 + $0x20] sm:$0xff]
    %v81 = vld [vmem:[#allocation2 + $0x28] sm:$0xff]
    %v82 = vld [vmem:[#allocation2 + $0x30] sm:$0xff]
    %v83 = vld [vmem:[#allocation2 + $0x38] sm:$0xff]
    %v84 = vld [vmem:[#allocation2 + $0x40] sm:$0xff]
    %v85 = vld [vmem:[#allocation2 + $0x48] sm:$0xff]
    %v86 = vld [vmem:[#allocation2 + $0x50] sm:$0xff]
    %v87 = vld [vmem:[#allocation2 + $0x58] sm:$0xff]
    %v88 = vld [vmem:[#allocation2 + $0x60] sm:$0xff]
    %v89 = vld [vmem:[#allocation2 + $0x68] sm:$0xff]
    %v90 = vld [vmem:[#allocation2 + $0x70] sm:$0xff]
    %v91 = vld [vmem:[#allocation2 + $0x78] sm:$0xff]
    %v92 = vperm.slane %v47, 1
    %93 = vmatpush.msra.mxu0 %v91
    %94 = vmatpush.msra.mxu0 %v90
    %95 = vmatpush.msra.mxu0 %v89
    %96 = vmatpush.msra.mxu0 %v88
    %97 = vmatpush.msra.mxu0 %v87
    %98 = vmatpush.msra.mxu0 %v86
    %99 = vmatpush.msra.mxu0 %v85
    %100 = vmatpush.msra.mxu0 %v84
    %101 = vmatpush.msra.mxu0 %v83
    %102 = vmatpush.msra.mxu0 %v82
    %103 = vmatpush.msra.mxu0 %v81
    %104 = vmatpush.msra.mxu0 %v80
    %105 = vmatpush.msra.mxu0 %v79
    %106 = vmatpush.msra.mxu0 %v78
    %107 = vmatpush.msra.mxu0 %v77
    %108 = vmatpush.msra.mxu0 %v76
    %109 = vmatmul.f32.gmra.mxu0 %v75
    %v110 = vpop.f32.mrf.mxu0
    %v111 = vadd.f32 %v92, %v110
    %112 = vdwg.mxu0
    %v113 = vmax.f32 %v111, 0.0
    %s114 = scalar_lea.vmem [#allocation2], 128
    %v115 = vld [vmem:[%s114] sm:$0xff]
    %v116 = vld [vmem:[%s114 + $0x8] sm:$0xff]
    %v117 = vld [vmem:[%s114 + $0x10] sm:$0xff]
    %v118 = vld [vmem:[%s114 + $0x18] sm:$0xff]
    %v119 = vld [vmem:[%s114 + $0x20] sm:$0xff]
    %v120 = vld [vmem:[%s114 + $0x28] sm:$0xff]
    %v121 = vld [vmem:[%s114 + $0x30] sm:$0xff]
    %v122 = vld [vmem:[%s114 + $0x38] sm:$0xff]
    %v123 = vld [vmem:[%s114 + $0x40] sm:$0xff]
    %v124 = vld [vmem:[%s114 + $0x48] sm:$0xff]
    %v125 = vld [vmem:[%s114 + $0x50] sm:$0xff]
    %v126 = vld [vmem:[%s114 + $0x58] sm:$0xff]
    %v127 = vld [vmem:[%s114 + $0x60] sm:$0xff]
    %v128 = vld [vmem:[%s114 + $0x68] sm:$0xff]
    %v129 = vld [vmem:[%s114 + $0x70] sm:$0xff]
    %v130 = vld [vmem:[%s114 + $0x78] sm:$0xff]
    %v131 = vperm.slane %v47, 2
    %132 = vmatpush.msra.mxu0 %v130
    %133 = vmatpush.msra.mxu0 %v129
    %134 = vmatpush.msra.mxu0 %v128
    %135 = vmatpush.msra.mxu0 %v127
    %136 = vmatpush.msra.mxu0 %v126
    %137 = vmatpush.msra.mxu0 %v125
    %138 = vmatpush.msra.mxu0 %v124
    %139 = vmatpush.msra.mxu0 %v123
    %140 = vmatpush.msra.mxu0 %v122
    %141 = vmatpush.msra.mxu0 %v121
    %142 = vmatpush.msra.mxu0 %v120
    %143 = vmatpush.msra.mxu0 %v119
    %144 = vmatpush.msra.mxu0 %v118
    %145 = vmatpush.msra.mxu0 %v117
    %146 = vmatpush.msra.mxu0 %v116
    %147 = vmatpush.msra.mxu0 %v115
    %148 = vmatmul.f32.gmra.mxu0 %v113
    %v149 = vpop.f32.mrf.mxu0
    %v150 = vadd.f32 %v131, %v149
    %151 = vdwg.mxu0
    %v152 = vmax.f32 %v150, 0.0
    %s153 = scalar_lea.vmem [#allocation2], 256
    %v154 = vld [vmem:[%s153] sm:$0xff]
    %v155 = vld [vmem:[%s153 + $0x8] sm:$0xff]
    %v156 = vld [vmem:[%s153 + $0x10] sm:$0xff]
    %v157 = vld [vmem:[%s153 + $0x18] sm:$0xff]
    %v158 = vld [vmem:[%s153 + $0x20] sm:$0xff]
    %v159 = vld [vmem:[%s153 + $0x28] sm:$0xff]
    %v160 = vld [vmem:[%s153 + $0x30] sm:$0xff]
    %v161 = vld [vmem:[%s153 + $0x38] sm:$0xff]
    %v162 = vld [vmem:[%s153 + $0x40] sm:$0xff]
    %v163 = vld [vmem:[%s153 + $0x48] sm:$0xff]
    %v164 = vld [vmem:[%s153 + $0x50] sm:$0xff]
    %v165 = vld [vmem:[%s153 + $0x58] sm:$0xff]
    %v166 = vld [vmem:[%s153 + $0x60] sm:$0xff]
    %v167 = vld [vmem:[%s153 + $0x68] sm:$0xff]
    %v168 = vld [vmem:[%s153 + $0x70] sm:$0xff]
    %v169 = vld [vmem:[%s153 + $0x78] sm:$0xff]
    %v170 = vperm.slane %v47, 3
    %171 = vmatpush.msra.mxu0 %v169
    %172 = vmatpush.msra.mxu0 %v168
    %173 = vmatpush.msra.mxu0 %v167
    %174 = vmatpush.msra.mxu0 %v166
    %175 = vmatpush.msra.mxu0 %v165
    %176 = vmatpush.msra.mxu0 %v164
    %177 = vmatpush.msra.mxu0 %v163
    %178 = vmatpush.msra.mxu0 %v162
    %179 = vmatpush.msra.mxu0 %v161
    %180 = vmatpush.msra.mxu0 %v160
    %181 = vmatpush.msra.mxu0 %v159
    %182 = vmatpush.msra.mxu0 %v158
    %183 = vmatpush.msra.mxu0 %v157
    %184 = vmatpush.msra.mxu0 %v156
    %185 = vmatpush.msra.mxu0 %v155
    %186 = vmatpush.msra.mxu0 %v154
    %187 = vmatmul.f32.gmra.mxu0 %v152
    %v188 = vpop.f32.mrf.mxu0
    %v189 = vadd.f32 %v170, %v188
    %190 = vdwg.mxu0
    %v191 = vmax.f32 %v189, 0.0
    %s192 = scalar_lea.vmem [#allocation2], 384
    %v193 = vld [vmem:[%s192] sm:$0xff]
    %v194 = vld [vmem:[%s192 + $0x8] sm:$0xff]
    %v195 = vld [vmem:[%s192 + $0x10] sm:$0xff]
    %v196 = vld [vmem:[%s192 + $0x18] sm:$0xff]
    %v197 = vld [vmem:[%s192 + $0x20] sm:$0xff]
    %v198 = vld [vmem:[%s192 + $0x28] sm:$0xff]
    %v199 = vld [vmem:[%s192 + $0x30] sm:$0xff]
    %v200 = vld [vmem:[%s192 + $0x38] sm:$0xff]
    %v201 = vld [vmem:[%s192 + $0x40] sm:$0xff]
    %v202 = vld [vmem:[%s192 + $0x48] sm:$0xff]
    %v203 = vld [vmem:[%s192 + $0x50] sm:$0xff]
    %v204 = vld [vmem:[%s192 + $0x58] sm:$0xff]
    %v205 = vld [vmem:[%s192 + $0x60] sm:$0xff]
    %v206 = vld [vmem:[%s192 + $0x68] sm:$0xff]
    %v207 = vld [vmem:[%s192 + $0x70] sm:$0xff]
    %v208 = vld [vmem:[%s192 + $0x78] sm:$0xff]
    %v209 = vperm.slane %v47, 4
    %210 = vmatpush.msra.mxu0 %v208
    %211 = vmatpush.msra.mxu0 %v207
    %212 = vmatpush.msra.mxu0 %v206
    %213 = vmatpush.msra.mxu0 %v205
    %214 = vmatpush.msra.mxu0 %v204
    %215 = vmatpush.msra.mxu0 %v203
    %216 = vmatpush.msra.mxu0 %v202
    %217 = vmatpush.msra.mxu0 %v201
    %218 = vmatpush.msra.mxu0 %v200
    %219 = vmatpush.msra.mxu0 %v199
    %220 = vmatpush.msra.mxu0 %v198
    %221 = vmatpush.msra.mxu0 %v197
    %222 = vmatpush.msra.mxu0 %v196
    %223 = vmatpush.msra.mxu0 %v195
    %224 = vmatpush.msra.mxu0 %v194
    %225 = vmatpush.msra.mxu0 %v193
    %226 = vmatmul.f32.gmra.mxu0 %v191
    %v227 = vpop.f32.mrf.mxu0
    %v228 = vadd.f32 %v209, %v227
    %229 = vdwg.mxu0
    %230 = vst [vmem:[%s4] sm:$0xff] %v228
    // Predicated region
    $region26: #{rlnetwork_forward.1} parent=1 // pred_check
      _
    $region27: #{rlnetwork_forward.1} parent=1 // pred_check_branch
      %232 = sbr.rel (0) target = $region29
    $region28: #{rlnetwork_forward.1} parent=1 // pred_region
      _
    $region29: #{rlnetwork_forward.1} parent=1 // pred_fallthru
      _
    // Predicated region
    $region30: #{rlnetwork_forward.1} parent=1 // pred_check
      _
    $region31: #{rlnetwork_forward.1} parent=1 // pred_check_branch
      %234 = sbr.rel (0) target = $region33
    $region32: #{rlnetwork_forward.1} parent=1 // pred_region
      _
    $region33: #{rlnetwork_forward.1} parent=1 // pred_fallthru
      _
    %235 = vsyncpa [#allocation3], 1
    %236 = vsyncpa [#allocation5], 1

</llo_original>
